<compile_context>
chip_gen: v6e
topology: v6e:2x2x1
jax: 0.10.0
libtpu: 0.0.40
codegen_flags: <defaults>
</compile_context>

<pallas_src>
import math

import jax
import jax.numpy as jnp
from jax import lax
from jax.experimental import pallas as pl
from jax.experimental.pallas import tpu as pltpu


def _linear_hmc_kernel(scal_ref, x_ref, w_ref, b_ref, y_ref, lp_ref):
    # scal_ref : SMEM f32[2] = [log_norm, inv_2var]
    # x_ref    : VMEM (B, In)
    # w_ref    : VMEM (Out, In)   -- PyTorch layout, no wrapper transpose
    # b_ref    : VMEM (1, Out)
    # y_ref    : VMEM (B, Out)
    # lp_ref   : SMEM (1, 1) scalar log-prior
    x = x_ref[...]
    w = w_ref[...]
    b = b_ref[...]

    # ---- hot path: F.linear => x @ w.T + b, contraction over In on the MXU.
    # dot_general contracts x dim 1 with w dim 1 directly (no transposed copy
    # of w is materialized). Keep f32 inputs here; at realistic shapes cast
    # x/w to bf16 (keeping preferred_element_type=f32) on v6e/v7x.
    y = lax.dot_general(
        x, w,
        dimension_numbers=(((1,), (1,)), ((), ())),
        preferred_element_type=jnp.float32,
    ) + b
    y_ref[...] = y.astype(y_ref.dtype)

    # ---- Gaussian prior log-prob, reduced to a sum of squares:
    #   sum_p [ log_norm - p^2 * inv_2var ] = N * log_norm - inv_2var * sum(p^2)
    log_norm = scal_ref[0]
    inv_2var = scal_ref[1]
    n_params = float(w_ref.shape[0] * w_ref.shape[1] + b_ref.shape[1])
    sq_sum = jnp.sum(w * w) + jnp.sum(b * b)
    lp_ref[0, 0] = n_params * log_norm - inv_2var * sq_sum


def linear_hmc_forward(x, w, b, prior_var):
    """x: (B, In) f32; w: (Out, In) f32; b: (Out,) f32; prior_var: f32 scalar.

    Returns (y, log_prior): y (B, Out) f32, log_prior scalar f32.
    """
    B, In = x.shape
    Out, In_w = w.shape
    assert In == In_w
    b2 = b.reshape(1, Out)  # lane-dense bias row for broadcast add

    # Tiny scalar prep done once per call in XLA on a *traced* prior_var, so
    # different prior_var values never trigger a Mosaic recompile.
    prior_var = jnp.asarray(prior_var, jnp.float32)
    log_norm = -0.5 * jnp.log(2.0 * jnp.pi * prior_var)
    inv_2var = 0.5 / prior_var
    scalars = jnp.stack([log_norm, inv_2var]).astype(jnp.float32)

    cost = pl.CostEstimate(
        flops=2 * B * In * Out,
        bytes_accessed=4 * (B * In + Out * In + Out + B * Out),
        transcendentals=0,
    )

    y, lp = pl.pallas_call(
        _linear_hmc_kernel,
        out_shape=(
            jax.ShapeDtypeStruct((B, Out), jnp.float32),
            jax.ShapeDtypeStruct((1, 1), jnp.float32),
        ),
        in_specs=[
            pl.BlockSpec(memory_space=pltpu.SMEM),   # [log_norm, inv_2var]
            pl.BlockSpec(memory_space=pltpu.VMEM),   # x
            pl.BlockSpec(memory_space=pltpu.VMEM),   # w  (Out, In)
            pl.BlockSpec(memory_space=pltpu.VMEM),   # b  (1, Out)
        ],
        out_specs=(
            pl.BlockSpec(memory_space=pltpu.VMEM),   # y
            pl.BlockSpec(memory_space=pltpu.SMEM),   # log_prior scalar
        ),
        cost_estimate=cost,
    )(scalars, x, w, b2)
    return y, lp[0, 0]


if __name__ == "__main__":
    # Deterministic synthetic parameters (module init: uniform(-0.1, 0.1)).
    key = jax.random.PRNGKey(0)
    k_x, k_w, k_b = jax.random.split(key, 3)

    batch, input_features, output_features = 8, 32, 16
    prior_var = 1.0

    x = jax.random.normal(k_x, (batch, input_features), dtype=jnp.float32)
    w = jax.random.uniform(
        k_w, (output_features, input_features), minval=-0.1, maxval=0.1,
        dtype=jnp.float32)
    b = jax.random.uniform(
        k_b, (output_features,), minval=-0.1, maxval=0.1, dtype=jnp.float32)

    fwd = jax.jit(linear_hmc_forward)
    y, log_prior = fwd(x, w, b, jnp.float32(prior_var))
    jax.block_until_ready((y, log_prior))

    # Reference check in plain JAX.
    y_ref = x @ w.T + b
    log_norm_ref = -0.5 * math.log(2.0 * math.pi * prior_var)
    lp_ref = (jnp.sum(log_norm_ref - w * w / (2.0 * prior_var))
              + jnp.sum(log_norm_ref - b * b / (2.0 * prior_var)))
    assert jnp.allclose(y, y_ref, atol=1e-5), "linear output mismatch"
    assert jnp.allclose(log_prior, lp_ref, atol=1e-4), "log prior mismatch"

    # Changing prior_var must reuse the same compiled kernel (traced scalar).
    y2, log_prior2 = fwd(x, w, b, jnp.float32(2.5))
    jax.block_until_ready((y2, log_prior2))
    lp_ref2 = (jnp.sum(-0.5 * math.log(2.0 * math.pi * 2.5) - w * w / 5.0)
               + jnp.sum(-0.5 * math.log(2.0 * math.pi * 2.5) - b * b / 5.0))
    assert jnp.allclose(log_prior2, lp_ref2, atol=1e-4), "log prior mismatch (pv=2.5)"

    print("KERNEL_OK")
</pallas_src>

<mosaic_0001>
module attributes {stable_mosaic.version = 11 : i64} {
  func.func @_linear_hmc_kernel(%arg0: memref<2xf32, #tpu.memory_space<smem>>, %arg1: memref<8x32xf32, #tpu.memory_space<vmem>>, %arg2: memref<16x32xf32, #tpu.memory_space<vmem>>, %arg3: memref<1x16xf32, #tpu.memory_space<vmem>>, %arg4: memref<8x16xf32, #tpu.memory_space<vmem>>, %arg5: memref<1x1xf32, #tpu.memory_space<smem>>) attributes {dimension_semantics = [], scalar_prefetch = 0 : i64, scratch_operands = 0 : i64, tpu.core_type = #tpu.core_type<tc>} {
    %c0 = arith.constant 0 : index
    %c0_0 = arith.constant 0 : index
    %0 = vector.load %arg1[%c0, %c0_0] : memref<8x32xf32, #tpu.memory_space<vmem>>, vector<8x32xf32>
    %c0_1 = arith.constant 0 : index
    %c0_2 = arith.constant 0 : index
    %1 = vector.load %arg2[%c0_1, %c0_2] : memref<16x32xf32, #tpu.memory_space<vmem>>, vector<16x32xf32>
    %c0_3 = arith.constant 0 : index
    %c0_4 = arith.constant 0 : index
    %2 = vector.load %arg3[%c0_3, %c0_4] : memref<1x16xf32, #tpu.memory_space<vmem>>, vector<1x16xf32>
    %cst = arith.constant dense<0.000000e+00> : vector<8x16xf32>
    %3 = tpu.matmul %0, %1, %cst {dimension_numbers = #tpu.dot_dimension_numbers<[1], [1], [0], [0], [0, 0, 1, 0], [], []>} : vector<8x32xf32>, vector<16x32xf32>, vector<8x16xf32> -> vector<8x16xf32>
    %4 = vector.broadcast %2 : vector<1x16xf32> to vector<8x16xf32>
    %5 = arith.addf %3, %4 : vector<8x16xf32>
    %c0_5 = arith.constant 0 : index
    %c0_6 = arith.constant 0 : index
    %6 = vector.load %arg4[%c0_5, %c0_6] : memref<8x16xf32, #tpu.memory_space<vmem>>, vector<8x16xf32>
    tpu.vector_store %arg4[%c0_5, %c0_6], %5 {strides = array<i32>} : memref<8x16xf32, #tpu.memory_space<vmem>>, vector<8x16xf32>,
    %c0_7 = arith.constant 0 : index
    %7 = memref.load %arg0[%c0_7] : memref<2xf32, #tpu.memory_space<smem>>
    %c1 = arith.constant 1 : index
    %8 = memref.load %arg0[%c1] : memref<2xf32, #tpu.memory_space<smem>>
    %9 = arith.mulf %1, %1 : vector<16x32xf32>
    %10 = vector.shape_cast %9 : vector<16x32xf32> to vector<1x16x32xf32>
    %cst_8 = arith.constant dense<0.000000e+00> : vector<1xf32>
    %11 = vector.multi_reduction <add>, %10, %cst_8 [1, 2] : vector<1x16x32xf32> to vector<1xf32>
    %12 = vector.shape_cast %11 : vector<1xf32> to vector<1x1x1xf32>
    %13 = vector.extract %12[0, 0, 0] : f32 from vector<1x1x1xf32>
    %14 = arith.mulf %2, %2 : vector<1x16xf32>
    %15 = vector.shape_cast %14 : vector<1x16xf32> to vector<1x1x16xf32>
    %cst_9 = arith.constant dense<0.000000e+00> : vector<1xf32>
    %16 = vector.multi_reduction <add>, %15, %cst_9 [1, 2] : vector<1x1x16xf32> to vector<1xf32>
    %17 = vector.shape_cast %16 : vector<1xf32> to vector<1x1x1xf32>
    %18 = vector.extract %17[0, 0, 0] : f32 from vector<1x1x1xf32>
    %19 = arith.addf %13, %18 : f32
    %cst_10 = arith.constant 5.280000e+02 : f32
    %20 = arith.mulf %cst_10, %7 : f32
    %21 = arith.mulf %8, %19 : f32
    %22 = arith.subf %20, %21 : f32
    %c0_11 = arith.constant 0 : index
    %c0_12 = arith.constant 0 : index
    %23 = memref.load %arg5[%c0_11, %c0_12] : memref<1x1xf32, #tpu.memory_space<smem>>
    memref.store %22, %arg5[%c0_11, %c0_12] : memref<1x1xf32, #tpu.memory_space<smem>>
    return
  }
}

</mosaic_0001>

<llo_original>
// kernel: linear_hmc_forward.1
$region0: #{linear_hmc_forward.1}
  #allocation0 [shape = 'u32[]', space=smem, size = 0x4, offset = 0x4, fixed_abs, tag = 'smem constant byte address 0x4 - core index']
  #allocation1 [shape = 'u32[144,128]{1,0:T(1,128)}', space=vmem, size = 0x12000, scoped, tag = 'internal scratch']
  %s0 = inlined_call_operand.vmem [shape: f32[2], index: 0, kind: input, shape index: {}]
  %s1 = inlined_call_operand.hbm [shape: f32[8,32], index: 1, kind: input, shape index: {}]
  %s2 = inlined_call_operand.vmem [shape: f32[16,32], index: 2, kind: input, shape index: {}]
  %s3 = inlined_call_operand.vmem [shape: f32[1,16], index: 3, kind: input, shape index: {}]
  %s4 = inlined_call_operand.hbm [shape: f32[8,16], index: 4, kind: output, shape index: {0}]
  %s5 = inlined_call_operand.hbm [shape: f32[1,1], index: 5, kind: output, shape index: {1}]
  %6 = xla_tuple %s4, %s5
  %s7 = sld [smem:[#allocation0]]
  $region42: #{linear_hmc_forward.1} parent=0
    _
  %s9 = ssub.s32 1, %s7
  %s10 = scalar_select 0, %s9, %s7
  $region1: #{linear_hmc_forward.1} parent=0
    #allocation2 [shape = 'u8[512]{0}', space=smem, size = 0x200, scoped, tag = 'input window, operand 0, single buffered']
    #allocation3 [shape = 's32[1]{0}', space=sflag, size = 0x4, scoped, tag = 'scoped memory for linear_hmc_forward.1']
    #allocation4 [shape = 's32[1]{0}', space=sflag, size = 0x4, scoped, tag = 'scoped memory for linear_hmc_forward.1']
    #allocation5 [shape = 's32[1]{0}', space=sflag, size = 0x4, scoped, tag = 'scoped memory for linear_hmc_forward.1']
    #allocation6 [shape = 's32[1]{0}', space=sflag, size = 0x4, scoped, tag = 'scoped memory for linear_hmc_forward.1']
    #allocation7 [shape = 'u8[4096]{0}', space=vmem, size = 0x1000, scoped, tag = 'input window, operand 1, single buffered']
    #allocation8 [shape = 'u8[4096]{0}', space=vmem, size = 0x1000, scoped, tag = 'output window, operand 0, single buffered']
    #allocation9 [shape = 'u8[512]{0}', space=smem, size = 0x200, scoped, tag = 'output window, operand 1, single buffered']
    %11 = vsyncpa [#allocation6], 0
    %12 = vsyncpa [#allocation3], 0
    %13 = vsyncpa [#allocation4], 0
    %14 = vsyncpa [#allocation5], 0
    // Predicated region
    $region2: #{linear_hmc_forward.1} parent=1 // pred_check
      _
    $region3: #{linear_hmc_forward.1} parent=1 // pred_check_branch
      %16 = sbr.rel (0) target = $region5
    $region4: #{linear_hmc_forward.1} parent=1 // pred_region
      %s18 = ssub.s32 16, 16
      %19 = vsyncadd [#allocation6], %s18
      %s21 = sshll.u32 %s0, 4
      %s22 = int_to_ptr.vmem [resolvable:$true] %s21
      %24 = dma.vmem_to_smem %s22, 16, [#allocation2], [#allocation6]
    $region5: #{linear_hmc_forward.1} parent=1 // pred_fallthru
      _
    // Predicated region
    $region6: #{linear_hmc_forward.1} parent=1 // pred_check
      _
    $region7: #{linear_hmc_forward.1} parent=1 // pred_check_branch
      %26 = sbr.rel (0) target = $region9
    $region8: #{linear_hmc_forward.1} parent=1 // pred_region
      %s28 = ssub.s32 128, 128
      %29 = vsyncadd [#allocation3], %s28
      %s31 = sshll.u32 [#allocation7], 4
      %s32 = int_to_ptr.vmem [resolvable:$true] %s31
      %34 = dma.hbm_to_vmem [thread:$0]  %s1, 128, %s32, [#allocation3]
    $region9: #{linear_hmc_forward.1} parent=1 // pred_fallthru
      _
    // Predicated region
    $region10: #{linear_hmc_forward.1} parent=1 // pred_check
      _
    $region11: #{linear_hmc_forward.1} parent=1 // pred_check_branch
      %36 = sbr.rel (0) target = $region13
    $region12: #{linear_hmc_forward.1} parent=1 // pred_region
      _
    $region13: #{linear_hmc_forward.1} parent=1 // pred_fallthru
      _
    // Predicated region
    $region14: #{linear_hmc_forward.1} parent=1 // pred_check
      _
    $region15: #{linear_hmc_forward.1} parent=1 // pred_check_branch
      %38 = sbr.rel (0) target = $region17
    $region16: #{linear_hmc_forward.1} parent=1 // pred_region
      _
    $region17: #{linear_hmc_forward.1} parent=1 // pred_fallthru
      _
    // Predicated region
    $region18: #{linear_hmc_forward.1} parent=1 // pred_check
      _
    $region19: #{linear_hmc_forward.1} parent=1 // pred_check_branch
      %40 = sbr.rel (0) target = $region21
    $region20: #{linear_hmc_forward.1} parent=1 // pred_region
      %41 = dma.done [#allocation6], 16
    $region21: #{linear_hmc_forward.1} parent=1 // pred_fallthru
      _
    // Predicated region
    $region22: #{linear_hmc_forward.1} parent=1 // pred_check
      _
    $region23: #{linear_hmc_forward.1} parent=1 // pred_check_branch
      %43 = sbr.rel (0) target = $region25
    $region24: #{linear_hmc_forward.1} parent=1 // pred_region
      %44 = dma.done [#allocation3], 128
    $region25: #{linear_hmc_forward.1} parent=1 // pred_fallthru
      _
    %45 = sfence
    %v46 = vld [vmem:[#allocation7] sm:$0xff]
    %v47 = vld [vmem:[%s2] sm:$0xff]
    %v48 = vld [vmem:[%s2 + $0x8] sm:$0xff]
    %v49 = vld [vmem:[%s3] sm:$0x1]
    %v51 = vlaneseq
    %v52 = vshrl.u32 %v51, 7
    %v53 = vsub.s32 0, %v52
    %v54 = vrot.slane %v49, %v53
    %vm56 = vcmask 261120
    %v58 = vsel %vm56, %v46, 0
    %v61 = vsel %vm56, %v47, 0
    %v64 = vsel %vm56, %v48, 0
    %66 = vmatprep.subr.mxu0 0.0
    %67 = vmatpush1.xpose.msra.mxu0 0.0
    %68 = vmatprep.subr.mxu0 0.0
    %69 = vmatpush1.xpose.msra.mxu0 0.0
    %70 = vmatprep.subr.mxu0 0.0
    %71 = vmatpush1.xpose.msra.mxu0 0.0
    %72 = vmatprep.subr.mxu0 0.0
    %73 = vmatpush1.xpose.msra.mxu0 0.0
    %74 = vmatprep.subr.mxu0 0.0
    %75 = vmatpush1.xpose.msra.mxu0 0.0
    %76 = vmatprep.subr.mxu0 0.0
    %77 = vmatpush1.xpose.msra.mxu0 0.0
    %78 = vmatprep.subr.mxu0 0.0
    %79 = vmatpush1.xpose.msra.mxu0 0.0
    %80 = vmatprep.subr.mxu0 0.0
    %81 = vmatpush1.xpose.msra.mxu0 0.0
    %82 = vmatprep.subr.mxu0 0.0
    %83 = vmatpush1.xpose.msra.mxu0 0.0
    %84 = vmatprep.subr.mxu0 0.0
    %85 = vmatpush1.xpose.msra.mxu0 0.0
    %86 = vmatprep.subr.mxu0 0.0
    %87 = vmatpush1.xpose.msra.mxu0 0.0
    %88 = vmatprep.subr.mxu0 0.0
    %89 = vmatpush1.xpose.msra.mxu0 0.0
    %90 = vmatprep.subr.mxu0 0.0
    %91 = vmatpush1.xpose.msra.mxu0 0.0
    %92 = vmatprep.subr.mxu0 0.0
    %93 = vmatpush1.xpose.msra.mxu0 0.0
    %94 = vmatprep.subr.mxu0 0.0
    %95 = vmatpush1.xpose.msra.mxu0 %v64
    %96 = vmatprep.subr.mxu0 0.0
    %97 = vmatpush1.xpose.msra.mxu0 %v61
    %98 = vmatprep.subr.mxu0 0.0
    %99 = vmatpush2.xpose.msra.mxu0 0.0
    %100 = vmatprep.subr.mxu0 0.0
    %101 = vmatpush2.xpose.msra.mxu0 0.0
    %102 = vmatprep.subr.mxu0 0.0
    %103 = vmatpush2.xpose.msra.mxu0 0.0
    %104 = vmatprep.subr.mxu0 0.0
    %105 = vmatpush2.xpose.msra.mxu0 0.0
    %106 = vmatprep.subr.mxu0 0.0
    %107 = vmatpush2.xpose.msra.mxu0 0.0
    %108 = vmatprep.subr.mxu0 0.0
    %109 = vmatpush2.xpose.msra.mxu0 0.0
    %110 = vmatprep.subr.mxu0 0.0
    %111 = vmatpush2.xpose.msra.mxu0 0.0
    %112 = vmatprep.subr.mxu0 0.0
    %113 = vmatpush2.xpose.msra.mxu0 0.0
    %114 = vmatprep.subr.mxu0 0.0
    %115 = vmatpush2.xpose.msra.mxu0 0.0
    %116 = vmatprep.subr.mxu0 0.0
    %117 = vmatpush2.xpose.msra.mxu0 0.0
    %118 = vmatprep.subr.mxu0 0.0
    %119 = vmatpush2.xpose.msra.mxu0 0.0
    %120 = vmatprep.subr.mxu0 0.0
    %121 = vmatpush2.xpose.msra.mxu0 0.0
    %122 = vmatprep.subr.mxu0 0.0
    %123 = vmatpush2.xpose.msra.mxu0 0.0
    %124 = vmatprep.subr.mxu0 0.0
    %125 = vmatpush2.xpose.msra.mxu0 0.0
    %126 = vmatprep.subr.mxu0 0.0
    %127 = vmatpush2.xpose.msra.mxu0 0.0
    %128 = vmatprep.subr.mxu0 0.0
    %129 = vmatpush2.xpose.msra.mxu0 0.0
    %130 = vmatprep.mubr.f32.mxu0 0.0
    %131 = vmatmul.mubr.f32.gmra.mxu0 %v58
    %v132 = vpop.f32.mrf.mxu0
    %v133 = vadd.f32 %v54, %v132
    %v134 = vpop.f32.mrf.mxu0
    %135 = vdwg.mxu0
    %vm136 = vcmask 130048
    %137 = vst.msk [vmem:[#allocation8] sm:$0xff] %vm136, %v133
    %s138 = sld [smem:[#allocation2]]
    %s139 = sld [smem:[#allocation2 + $0x1]]
    %v140 = vmul.f32 %v47, %v47
    %v141 = vmul.f32 %v48, %v48
    %v142 = vsel %vm56, %v140, 0.0
    %v143 = vsel %vm56, %v141, 0.0
    %v144 = vadd.f32 %v142, %v143
    %145 = vadd.xlane.f32.xlu0 %v144
    %v146 = vpop.xlane.xlu0 %145
    %v147 = vrot.slane %v146, 4
    %v148 = vadd.f32 %v146, %v147
    %v149 = vrot.slane %v148, 2
    %v150 = vadd.f32 %v148, %v149
    %v151 = vrot.slane %v150, 1
    %v152 = vadd.f32 %v150, %v151
    %s153 = vtos %v152
    %v154 = vmul.f32 %v49, %v49
    %vm155 = vcmask 122880
    %v156 = vsel %vm155, %v154, 0.0
    %157 = vadd.xlane.f32.xlu0 %v156
    %v158 = vpop.xlane.xlu0 %157
    %v159 = vrot.slane %v158, 4
    %v160 = vadd.f32 %v158, %v159
    %v161 = vrot.slane %v160, 2
    %v162 = vadd.f32 %v160, %v161
    %v163 = vrot.slane %v162, 1
    %v164 = vadd.f32 %v162, %v163
    %s165 = vtos %v164
    %s166 = sadd.f32 %s153, %s165
    %s167 = smul.f32 %s138, 528.0
    %s168 = smul.f32 %s139, %s166
    %s169 = ssub.f32 %s167, %s168
    %s170 = scalar_lea.smem [#allocation9], 0
    %171 = sst [smem:[%s170]] %s169
    // Predicated region
    $region26: #{linear_hmc_forward.1} parent=1 // pred_check
      _
    $region27: #{linear_hmc_forward.1} parent=1 // pred_check_branch
      %173 = sbr.rel (0) target = $region29
    $region28: #{linear_hmc_forward.1} parent=1 // pred_region
      %s175 = ssub.s32 128, 128
      %176 = vsyncadd [#allocation4], %s175
      %s178 = sshll.u32 [#allocation8], 4
      %s179 = int_to_ptr.vmem [resolvable:$true] %s178
      %181 = dma.vmem_to_hbm [thread:$0]  %s179, 128, %s4, [#allocation4]
    $region29: #{linear_hmc_forward.1} parent=1 // pred_fallthru
      _
    // Predicated region
    $region30: #{linear_hmc_forward.1} parent=1 // pred_check
      _
    $region31: #{linear_hmc_forward.1} parent=1 // pred_check_branch
      %183 = sbr.rel (0) target = $region33
    $region32: #{linear_hmc_forward.1} parent=1 // pred_region
      %s185 = ssub.s32 16, 16
      %186 = vsyncadd [#allocation5], %s185
      %189 = dma.smem_to_hbm [#allocation9], 16, %s5, [#allocation5]
    $region33: #{linear_hmc_forward.1} parent=1 // pred_fallthru
      _
    // Predicated region
    $region34: #{linear_hmc_forward.1} parent=1 // pred_check
      _
    $region35: #{linear_hmc_forward.1} parent=1 // pred_check_branch
      %191 = sbr.rel (0) target = $region37
    $region36: #{linear_hmc_forward.1} parent=1 // pred_region
      %192 = dma.done [#allocation4], 128
    $region37: #{linear_hmc_forward.1} parent=1 // pred_fallthru
      _
    // Predicated region
    $region38: #{linear_hmc_forward.1} parent=1 // pred_check
      _
    $region39: #{linear_hmc_forward.1} parent=1 // pred_check_branch
      %194 = sbr.rel (0) target = $region41
    $region40: #{linear_hmc_forward.1} parent=1 // pred_region
      %195 = dma.done [#allocation5], 16
    $region41: #{linear_hmc_forward.1} parent=1 // pred_fallthru
      _
    %196 = sfence
    %197 = vsyncpa [#allocation3], 1
    %198 = vsyncpa [#allocation4], 1
    %199 = vsyncpa [#allocation5], 1
    %200 = vsyncpa [#allocation6], 1

</llo_original>
